<compile_context>
chip_gen: v5e
topology: v5e:2x2
jax: 0.10.0
libtpu: 0.0.40
codegen_flags: <defaults>
</compile_context>

<pallas_src>
import jax
import jax.numpy as jnp
from jax import lax
from jax.experimental import pallas as pl
from jax.experimental.pallas import tpu as pltpu


def _make_accuracy_kernel(n_total: int, tile_n: int):
    """Build the per-tile kernel closed over the true row count."""
    inv_n = 1.0 / float(n_total)

    def kernel(x_ref, t_ref, out_ref, count_ref):
        i = pl.program_id(0)

        @pl.when(i == 0)
        def _init():
            count_ref[...] = jnp.zeros_like(count_ref)

        x = x_ref[...]                                   # (tile_n, C), input dtype
        tn, c = x.shape

        # First-occurrence argmax over the class axis (== torch.max(dim=1)[1]).
        row_max = jnp.max(x, axis=1, keepdims=True)                    # (tn, 1)
        col_idx = lax.broadcasted_iota(jnp.int32, (tn, c), 1)          # (tn, C)
        max_index = jnp.min(
            jnp.where(x == row_max, col_idx, jnp.int32(c)),
            axis=1,
            keepdims=True,
        )                                                               # (tn, 1)

        # Mask rows past the true N (last, partially-filled tile reads OOB data).
        row_id = i * tile_n + lax.broadcasted_iota(jnp.int32, (tn, 1), 0)
        valid = row_id < n_total                                        # (tn, 1)

        matches = jnp.logical_and(max_index == t_ref[...], valid)      # (tn, 1)
        count_ref[...] += jnp.sum(
            matches.astype(jnp.int32), axis=(0, 1), keepdims=True
        )

        @pl.when(i == pl.num_programs(0) - 1)
        def _finalize():
            out_ref[...] = count_ref[...].astype(jnp.float32) * inv_n

    return kernel


def accuracy(x: jax.Array, targets: jax.Array, *, tile_n: int | None = None) -> jax.Array:
    """x: (N, C) logits (any float dtype), targets: (N,) int labels -> scalar f32."""
    n, c = x.shape
    t2d = targets.astype(jnp.int32).reshape(n, 1)
    itemsize = jnp.dtype(x.dtype).itemsize

    # Pick tile_n so one (tile_n, C) block is a few MiB (double-buffered by the
    # pipeline, so ~2x this lives in VMEM); round to a sublane multiple.
    if tile_n is None:
        budget_bytes = 4 * 1024 * 1024
        tile_n = max(8, budget_bytes // max(1, c * itemsize))
    tile_n = min(tile_n, n)
    if tile_n < n:
        tile_n = max(8, (tile_n // 8) * 8)
    grid_n = pl.cdiv(n, tile_n)

    kernel = _make_accuracy_kernel(n, tile_n)

    cost = pl.CostEstimate(
        flops=5 * n * c,                       # max, cmp, select, min, cmp — all cheap VPU/XLU
        transcendentals=0,
        bytes_accessed=n * c * itemsize + n * 4 + 4,
    )

    out = pl.pallas_call(
        kernel,
        out_shape=jax.ShapeDtypeStruct((1, 1), jnp.float32),
        grid_spec=pltpu.PrefetchScalarGridSpec(
            num_scalar_prefetch=0,
            grid=(grid_n,),
            in_specs=[
                pl.BlockSpec((tile_n, c), lambda i: (i, 0)),
                pl.BlockSpec((tile_n, 1), lambda i: (i, 0)),
            ],
            # Same (1,1) block every step -> resident accumulator output.
            out_specs=pl.BlockSpec((1, 1), lambda i: (0, 0)),
            scratch_shapes=[pltpu.VMEM((1, 1), jnp.int32)],
        ),
        compiler_params=pltpu.CompilerParams(
            dimension_semantics=("arbitrary",),     # grid axis carries the accumulator
            vmem_limit_bytes=64 * 1024 * 1024,
        ),
        cost_estimate=cost,
    )(x, t2d)
    return out[0, 0]


if __name__ == "__main__":
    key = jax.random.PRNGKey(0)
    kx, kt = jax.random.split(key)

    # Small shapes: batch=20 (deliberately NOT a multiple of tile_n=8 so the
    # partial-tile masking path is exercised), classes=32.
    N, C = 20, 32
    x = jax.random.normal(kx, (N, C), dtype=jnp.float32)
    targets = jax.random.randint(kt, (N,), 0, C, dtype=jnp.int32)

    acc = accuracy(x, targets, tile_n=8)
    acc = jax.block_until_ready(acc)

    # Pure-JAX reference check.
    ref = jnp.mean((jnp.argmax(x, axis=1) == targets).astype(jnp.float32))
    assert jnp.allclose(acc, ref), (acc, ref)

    print("KERNEL_OK")
</pallas_src>

<mosaic_0001>
module attributes {stable_mosaic.version = 11 : i64} {
  func.func @kernel(%arg0: i32, %arg1: memref<8x32xf32, #tpu.memory_space<vmem>>, %arg2: memref<8x1xi32, #tpu.memory_space<vmem>>, %arg3: memref<1x1xf32, #tpu.memory_space<vmem>>, %arg4: memref<1x1xi32, #tpu.memory_space<vmem>>) attributes {dimension_semantics = [#tpu.dimension_semantics<arbitrary>], iteration_bounds = array<i64: 3>, scalar_prefetch = 0 : i64, scratch_operands = 1 : i64, tpu.core_type = #tpu.core_type<tc>, window_params = [{transform_indices = @transform_0, window_bounds = array<i64: 8, 32>}, {transform_indices = @transform_1, window_bounds = array<i64: 8, 1>}, {pipeline_mode = #tpu.pipeline_mode<synchronous>, transform_indices = @transform_2, window_bounds = array<i64: 1, 1>}]} {
    %c0_i32 = arith.constant 0 : i32
    %0 = arith.cmpi eq, %arg0, %c0_i32 : i32
    %1 = arith.extui %0 : i1 to i32
    %c0_i32_0 = arith.constant 0 : i32
    %2 = arith.cmpi ne, %1, %c0_i32_0 : i32
    scf.if %2 {
      %c0_i32_11 = arith.constant 0 : i32
      %34 = vector.broadcast %c0_i32_11 : i32 to vector<1x1xi32>
      %c0_12 = arith.constant 0 : index
      %c0_13 = arith.constant 0 : index
      %35 = vector.load %arg4[%c0_12, %c0_13] : memref<1x1xi32, #tpu.memory_space<vmem>>, vector<1x1xi32>
      tpu.vector_store %arg4[%c0_12, %c0_13], %34 {strides = array<i32>} : memref<1x1xi32, #tpu.memory_space<vmem>>, vector<1x1xi32>,
    } else {
    }
    %c0 = arith.constant 0 : index
    %c0_1 = arith.constant 0 : index
    %3 = vector.load %arg1[%c0, %c0_1] : memref<8x32xf32, #tpu.memory_space<vmem>>, vector<8x32xf32>
    %cst = arith.constant dense<0xFF800000> : vector<8xf32>
    %4 = vector.multi_reduction <maximumf>, %3, %cst [1] : vector<8x32xf32> to vector<8xf32>
    %5 = vector.shape_cast %4 : vector<8xf32> to vector<8x1xf32>
    %6 = tpu.iota {dimensions = array<i32: 1>} : vector<8x32xi32>
    %7 = vector.broadcast %5 : vector<8x1xf32> to vector<8x32xf32>
    %8 = arith.cmpf oeq, %3, %7 : vector<8x32xf32>
    %c32_i32 = arith.constant 32 : i32
    %9 = vector.broadcast %c32_i32 : i32 to vector<8x32xi32>
    %10 = arith.select %8, %6, %9 : vector<8x32xi1>, vector<8x32xi32>
    %cst_2 = arith.constant dense<2147483647> : vector<8xi32>
    %11 = vector.multi_reduction <minsi>, %10, %cst_2 [1] : vector<8x32xi32> to vector<8xi32>
    %12 = vector.shape_cast %11 : vector<8xi32> to vector<8x1xi32>
    %c8_i32 = arith.constant 8 : i32
    %13 = arith.muli %arg0, %c8_i32 : i32
    %14 = tpu.iota {dimensions = array<i32: 0>} : vector<8x1xi32>
    %15 = vector.broadcast %13 : i32 to vector<8x1xi32>
    %16 = arith.addi %15, %14 : vector<8x1xi32>
    %c20_i32 = arith.constant 20 : i32
    %17 = vector.broadcast %c20_i32 : i32 to vector<8x1xi32>
    %18 = arith.cmpi slt, %16, %17 : vector<8x1xi32>
    %c0_3 = arith.constant 0 : index
    %c0_4 = arith.constant 0 : index
    %19 = vector.load %arg2[%c0_3, %c0_4] : memref<8x1xi32, #tpu.memory_space<vmem>>, vector<8x1xi32>
    %20 = arith.cmpi eq, %12, %19 : vector<8x1xi32>
    %21 = arith.andi %20, %18 : vector<8x1xi1>
    %c0_5 = arith.constant 0 : index
    %c0_6 = arith.constant 0 : index
    %22 = vector.load %arg4[%c0_5, %c0_6] : memref<1x1xi32, #tpu.memory_space<vmem>>, vector<1x1xi32>
    %23 = arith.extui %21 : vector<8x1xi1> to vector<8x1xi32>
    %24 = vector.shape_cast %23 : vector<8x1xi32> to vector<1x8x1xi32>
    %cst_7 = arith.constant dense<0> : vector<1xi32>
    %25 = vector.multi_reduction <add>, %24, %cst_7 [1, 2] : vector<1x8x1xi32> to vector<1xi32>
    %26 = vector.shape_cast %25 : vector<1xi32> to vector<1x1x1xi32>
    %27 = vector.extract %26[0, 0, 0] : i32 from vector<1x1x1xi32>
    %28 = vector.broadcast %27 : i32 to vector<1x1xi32>
    %29 = arith.addi %22, %28 : vector<1x1xi32>
    %c0_8 = arith.constant 0 : index
    %c0_9 = arith.constant 0 : index
    %30 = vector.load %arg4[%c0_8, %c0_9] : memref<1x1xi32, #tpu.memory_space<vmem>>, vector<1x1xi32>
    tpu.vector_store %arg4[%c0_8, %c0_9], %29 {strides = array<i32>} : memref<1x1xi32, #tpu.memory_space<vmem>>, vector<1x1xi32>,
    %c2_i32 = arith.constant 2 : i32
    %31 = arith.cmpi eq, %arg0, %c2_i32 : i32
    %32 = arith.extui %31 : i1 to i32
    %c0_i32_10 = arith.constant 0 : i32
    %33 = arith.cmpi ne, %32, %c0_i32_10 : i32
    scf.if %33 {
      %c0_11 = arith.constant 0 : index
      %c0_12 = arith.constant 0 : index
      %34 = vector.load %arg4[%c0_11, %c0_12] : memref<1x1xi32, #tpu.memory_space<vmem>>, vector<1x1xi32>
      %35 = arith.sitofp %34 : vector<1x1xi32> to vector<1x1xf32>
      %cst_13 = arith.constant 5.000000e-02 : f32
      %36 = vector.broadcast %cst_13 : f32 to vector<1x1xf32>
      %37 = arith.mulf %35, %36 : vector<1x1xf32>
      %c0_14 = arith.constant 0 : index
      %c0_15 = arith.constant 0 : index
      %38 = vector.load %arg3[%c0_14, %c0_15] : memref<1x1xf32, #tpu.memory_space<vmem>>, vector<1x1xf32>
      tpu.vector_store %arg3[%c0_14, %c0_15], %37 {strides = array<i32>} : memref<1x1xf32, #tpu.memory_space<vmem>>, vector<1x1xf32>,
    } else {
    }
    return
  }
  func.func @transform_0(%arg0: i32) -> (i32, i32) {
    %c0_i32 = arith.constant 0 : i32
    %c0_i32_0 = arith.constant 0 : i32
    return %arg0, %c0_i32 : i32, i32
  }
  func.func @transform_1(%arg0: i32) -> (i32, i32) {
    %c0_i32 = arith.constant 0 : i32
    %c0_i32_0 = arith.constant 0 : i32
    return %arg0, %c0_i32 : i32, i32
  }
  func.func @transform_2(%arg0: i32) -> (i32, i32) {
    %c0_i32 = arith.constant 0 : i32
    %c0_i32_0 = arith.constant 0 : i32
    %c0_i32_1 = arith.constant 0 : i32
    return %c0_i32, %c0_i32_0 : i32, i32
  }
}

</mosaic_0001>

<llo_original>
// kernel: tpu_custom_call.1
$region0: #{tpu_custom_call.1}
  #allocation0 [shape = 'u32[]', space=smem, size = 0x4, offset = 0x4, fixed_abs, tag = 'smem constant byte address 0x4 - core index']
  #allocation1 [shape = 'u32[72,128]{1,0:T(1,128)}', space=vmem, size = 0x9000, scoped, tag = 'internal scratch']
  #allocation2 [shape = 's32[1,1]{1,0:T(1,128)}', space=vmem, size = 0x200, scoped, tag = 'scratch operand']
  %s0 = inlined_call_operand.vmem [shape: f32[20,32], index: 0, kind: input, shape index: {}]
  %s1 = inlined_call_operand.vmem [shape: s32[20,1], index: 1, kind: input, shape index: {}]
  %s2 = inlined_call_operand.hbm [shape: f32[1,1], index: 2, kind: output, shape index: {}]
  %s3 = sld [smem:[#allocation0]]
  $region49: #{tpu_custom_call.1} parent=0
    _
  %s5 = ssub.s32 1, %s3
  %s6 = scalar_select 0, %s5, %s3
  $region1: #{tpu_custom_call.1} parent=0
    #allocation3 [shape = 'u8[512]{0}', space=vmem, size = 0x400, scoped, tag = 'output window, operand 0, single buffered']
    #allocation4 [shape = 's32[2]{0}', space=sflag, size = 0x8, scoped, tag = 'scoped memory for tpu_custom_call.1']
    %7 = vsyncpa [#allocation4], 0
    loop: start=0, step=1, limit=5
    $region2: #{tpu_custom_call.1} parent=1 // loop_pre_header
      _
    $region3: #{tpu_custom_call.1} parent=1 // loop_header
      %s9 = sphi 0, %s13
      %p10 = scmp.ge.s32.totalorder %s9, 5
      %s19 = sphi 0, %s21
      %s22 = sphi 0, %s19
      %s23 = sphi 0, %s22
      %s39 = sphi 0, %s23
      %s45 = sphi 0, %s47
      %s48 = sphi 0, %s45
      %s49 = sphi 0, %s48
      %s65 = sphi 0, %s49
      %s69 = sphi 0, %s69
      %s71 = sphi 0, %s69
      %s72 = sphi 0, %s71
      %s86 = sphi 0, %s72
    $region4: #{tpu_custom_call.1} parent=1 // loop_header_branch
      %12 = sbr.rel (%p10) target = $region8
    $region5: #{tpu_custom_call.1} parent=1 // loop_body
      %s14 = ssub.s32 %s9, 1
      %s15 = ssub.s32 %s9, 2
      %s16 = sadd.s32 %s9, 1
      %s17 = ssub.s32 %s9, %s16
      %p18 = scmp.eq.s32.totalorder %s17, 0
      %s20 = sadd.s32 %s19, 1
      %s21 = scalar_select %p18, %s19, %s20
      %p24 = pneg %p18
      %p25 = scmp.eq.s32.totalorder %s9, 2
      %p26 = por %p24, %p25
      %p27 = scmp.ne.s32.totalorder %s19, %s22
      %p28 = scmp.eq.s32.totalorder %s9, 0
      %p29 = por %p27, %p28
      %p30 = scmp.ne.s32.totalorder %s19, %s22
      %p31 = scmp.eq.s32.totalorder %s14, 2
      %p32 = por %p30, %p31
      %p33 = scmp.ne.s32.totalorder %s22, %s23
      %p34 = scmp.eq.s32.totalorder %s14, 0
      %p35 = por %p33, %p34
      %p36 = scmp.ne.s32.totalorder %s22, %s23
      %p37 = scmp.eq.s32.totalorder %s15, 2
      %p38 = por %p36, %p37
      %p40 = scmp.ne.s32.totalorder %s23, %s39
      %p41 = scmp.eq.s32.totalorder %s15, 0
      %p42 = por %p40, %p41
      %s43 = ssub.s32 %s9, %s16
      %p44 = scmp.eq.s32.totalorder %s43, 0
      %s46 = sadd.s32 %s45, 1
      %s47 = scalar_select %p44, %s45, %s46
      %p50 = pneg %p44
      %p51 = scmp.eq.s32.totalorder %s9, 2
      %p52 = por %p50, %p51
      %p53 = scmp.ne.s32.totalorder %s45, %s48
      %p54 = scmp.eq.s32.totalorder %s9, 0
      %p55 = por %p53, %p54
      %p56 = scmp.ne.s32.totalorder %s45, %s48
      %p57 = scmp.eq.s32.totalorder %s14, 2
      %p58 = por %p56, %p57
      %p59 = scmp.ne.s32.totalorder %s48, %s49
      %p60 = scmp.eq.s32.totalorder %s14, 0
      %p61 = por %p59, %p60
      %p62 = scmp.ne.s32.totalorder %s48, %s49
      %p63 = scmp.eq.s32.totalorder %s15, 2
      %p64 = por %p62, %p63
      %p66 = scmp.ne.s32.totalorder %s49, %s65
      %p67 = scmp.eq.s32.totalorder %s15, 0
      %p68 = por %p66, %p67
      %s70 = sadd.s32 %s69, 1
      %p73 = scmp.eq.s32.totalorder %s9, 2
      %p74 = scmp.ne.s32.totalorder %s69, %s71
      %p75 = scmp.eq.s32.totalorder %s9, 0
      %p76 = por %p74, %p75
      %p77 = scmp.ne.s32.totalorder %s69, %s71
      %p78 = scmp.eq.s32.totalorder %s14, 2
      %p79 = por %p77, %p78
      %p80 = scmp.ne.s32.totalorder %s71, %s72
      %p81 = scmp.eq.s32.totalorder %s14, 0
      %p82 = por %p80, %p81
      %p83 = scmp.ne.s32.totalorder %s71, %s72
      %p84 = scmp.eq.s32.totalorder %s15, 2
      %p85 = por %p83, %p84
      %p87 = scmp.ne.s32.totalorder %s72, %s86
      %p88 = scmp.eq.s32.totalorder %s15, 0
      %p89 = por %p87, %p88
      %p90 = scmp.le.s32.totalorder 1, %s9
      %p91 = scmp.lt.s32.totalorder %s9, 4
      %p92 = pnand %p90, %p91
      %p93 = pneg %p92
      // Predicated region
      $region9: #{tpu_custom_call.1} parent=5 // pred_check
        _
      $region10: #{tpu_custom_call.1} parent=5 // pred_check_branch
        %95 = sbr.rel (%p92) target = $region12
      $region11: #{tpu_custom_call.1} parent=5 // pred_region
        %s96 = ssub.s32 %s9, 1
      $region12: #{tpu_custom_call.1} parent=5 // pred_fallthru
        _
      %p97 = scmp.lt.s32.totalorder %s9, 3
      // Predicated region
      $region13: #{tpu_custom_call.1} parent=5 // pred_check
        %p98 = pneg %p97
      $region14: #{tpu_custom_call.1} parent=5 // pred_check_branch
        %100 = sbr.rel (%p98) target = $region16
      $region15: #{tpu_custom_call.1} parent=5 // pred_region
        // Predicated region
        $region17: #{tpu_custom_call.1} parent=15 // pred_check
          %p101 = pneg %p29
        $region18: #{tpu_custom_call.1} parent=15 // pred_check_branch
          %103 = sbr.rel (%p101) target = $region20
        $region19: #{tpu_custom_call.1} parent=15 // pred_region
          %p104 = scmp.lt.s32.totalorder %s9, 2
          %s105 = scalar_select %p104, %s9, 2
          %s106 = smul.addr %s105, 8
          %s107 = scalar_lea.vmem %s0, %s106
        $region20: #{tpu_custom_call.1} parent=15 // pred_fallthru
          _
        // Predicated region
        $region21: #{tpu_custom_call.1} parent=15 // pred_check
          %p108 = pneg %p55
        $region22: #{tpu_custom_call.1} parent=15 // pred_check_branch
          %110 = sbr.rel (%p108) target = $region24
        $region23: #{tpu_custom_call.1} parent=15 // pred_region
          %p111 = scmp.lt.s32.totalorder %s9, 2
          %s112 = scalar_select %p111, %s9, 2
          %s113 = smul.addr %s112, 8
          %s114 = scalar_lea.vmem %s1, %s113
        $region24: #{tpu_custom_call.1} parent=15 // pred_fallthru
          _
      $region16: #{tpu_custom_call.1} parent=5 // pred_fallthru
        _
      %p115 = scmp.le.s32.totalorder 1, %s9
      %p116 = scmp.lt.s32.totalorder %s9, 4
      %p117 = pnand %p115, %p116
      %p118 = pneg %p117
      // Predicated region
      $region25: #{tpu_custom_call.1} parent=5 // pred_check
        _
      $region26: #{tpu_custom_call.1} parent=5 // pred_check_branch
        %120 = sbr.rel (%p117) target = $region28
      $region27: #{tpu_custom_call.1} parent=5 // pred_region
        %s121 = ssub.s32 %s9, 1
        %p122 = scmp.lt.s32.totalorder %s14, 2
        %s123 = scalar_select %p122, %s14, 2
        %s124 = smul.addr %s123, 8
        %s125 = scalar_lea.vmem %s0, %s124
        %p126 = pneg %p35
        %p127 = pneg %p32
        %p128 = scmp.lt.s32.totalorder %s14, 2
        %s129 = scalar_select %p128, %s14, 2
        %s130 = smul.addr %s129, 8
        %s131 = scalar_lea.vmem %s1, %s130
        %p132 = pneg %p61
        %p133 = pneg %p58
        %p134 = pneg %p82
        %p135 = pneg %p79
        %p136 = scmp.lt.s32.totalorder %s14, 2
        %s137 = scalar_select %p136, %s14, 2
        %s138 = smul.addr %s137, 8
        %s139 = scalar_lea.vmem %s0, %s138
        %p140 = scmp.lt.s32.totalorder %s14, 2
        %s141 = scalar_select %p140, %s14, 2
        %s142 = smul.addr %s141, 8
        %s143 = scalar_lea.vmem %s1, %s142
        %p144 = scmp.eq.s32.totalorder %s14, 0
        // Predicated region
        $region29: #{tpu_custom_call.1} parent=27 // pred_check
          %p145 = pneg %p144
        $region30: #{tpu_custom_call.1} parent=27 // pred_check_branch
          %147 = sbr.rel (%p145) target = $region32
        $region31: #{tpu_custom_call.1} parent=27 // pred_region
          %vm148 = vcmask 0
          %149 = vst.msk [vmem:[#allocation2] sm:$0x1] %vm148, 0
        $region32: #{tpu_custom_call.1} parent=27 // pred_fallthru
          _
        %v150 = vld [vmem:[%s139] sm:$0xff]
        %vm151 = vcmask 261120
        %v152 = vsel %vm151, %v150, -inf
        %153 = vmax.xlane.f32.xlu0 %v152
        %v154 = vpop.xlane.xlu0 %153
        %v155 = vlaneseq
        %v156 = vand.u32 %v155, 127
        %vm157 = vcmp.eq.f32.partialorder %v150, %v154
        %v158 = vsel %vm157, %v156, 32
        %v159 = vsel %vm151, %v158, 2147483647
        %v160 = vand.u32 %v159, 65535
        %v161 = vshra.s32 %v159, 16
        %v162 = vcvt.s32.f32 %v160
        %v163 = vcvt.s32.f32 %v161
        %164 = vmin.xlane.f32.xlu0 %v163
        %v165 = vpop.xlane.xlu0 %164
        %vm166 = vcmp.eq.f32.partialorder %v163, %v165
        %v167 = vsel %vm166, %v162, inf
        %168 = vmin.xlane.f32.xlu0 %v167
        %v169 = vpop.xlane.xlu0 %168
        %v170 = vcvt.f32.s32 %v169
        %v171 = vcvt.f32.s32 %v165
        %v172 = vshll.u32 %v171, 16
        %v173 = vadd.s32 %v172, %v170
        %s174 = smul.u32 %s14, 8
        %v175 = vlaneseq
        %v176 = vshrl.u32 %v175, 7
        %v177 = vstv %s174
        %v178 = vadd.s32 %v177, %v176
        %vm179 = vcmp.lt.s32.totalorder %v178, 20
        %v180 = vld [vmem:[%s143] sm:$0xff]
        %vm181 = vcmp.eq.s32.totalorder %v173, %v180
        %vm182 = vmand %vm181, %vm179
        %v183 = vld [vmem:[#allocation2] sm:$0x1]
        %v184 = vsel %vm182, 1, 0
        %vm185 = vcmask 7168
        %v186 = vsel %vm185, %v184, 0
        %v187 = vand.u32 %v186, 65535
        %v188 = vshrl.u32 %v186, 16
        %v189 = vcvt.s32.f32 %v187
        %v190 = vcvt.s32.f32 %v188
        %191 = vadd.xlane.f32.xlu0 %v189
        %v192 = vpop.xlane.xlu0 %191
        %193 = vadd.xlane.f32.xlu0 %v190
        %v194 = vpop.xlane.xlu0 %193
        %v195 = vcvt.f32.s32 %v192
        %v196 = vcvt.f32.s32 %v194
        %v197 = vshll.u32 %v196, 16
        %v198 = vadd.s32 %v197, %v195
        %v199 = vrot.slane %v198, 4
        %v200 = vadd.s32 %v198, %v199
        %v201 = vrot.slane %v200, 2
        %v202 = vadd.s32 %v200, %v201
        %v203 = vrot.slane %v202, 1
        %v204 = vadd.s32 %v202, %v203
        %s205 = vtos %v204
        %v206 = vstv %s205
        %v207 = vadd.s32 %v183, %v206
        %vm208 = vcmask 0
        %209 = vst.msk [vmem:[#allocation2] sm:$0x1] %vm208, %v207
        %p210 = scmp.eq.s32.totalorder %s14, 2
        // Predicated region
        $region33: #{tpu_custom_call.1} parent=27 // pred_check
          %p211 = pneg %p210
        $region34: #{tpu_custom_call.1} parent=27 // pred_check_branch
          %213 = sbr.rel (%p211) target = $region36
        $region35: #{tpu_custom_call.1} parent=27 // pred_region
          %v214 = vld [vmem:[#allocation2] sm:$0x1]
          %v215 = vcvt.s32.f32 %v214
          %v216 = vmul.f32 %v215, 0.05
          %217 = vst.msk [vmem:[#allocation3] sm:$0x1] %vm208, %v216
        $region36: #{tpu_custom_call.1} parent=27 // pred_fallthru
          _
        // Predicated region
        $region37: #{tpu_custom_call.1} parent=27 // pred_check
          %p218 = pneg %p79
        $region38: #{tpu_custom_call.1} parent=27 // pred_check_branch
          %220 = sbr.rel (%p218) target = $region40
        $region39: #{tpu_custom_call.1} parent=27 // pred_region
          %222 = vsyncadd [#allocation4], 0
          %s224 = sshll.u32 [#allocation3], 4
          %s225 = int_to_ptr.vmem [resolvable:$true] %s224
          %s226 = sshll.u32 %s2, 4
          %s227 = int_to_ptr.hbm [resolvable:$true] %s226
          %229 = dma.vmem_to_hbm [thread:$0]  %s225, 16, %s227, [#allocation4]
        $region40: #{tpu_custom_call.1} parent=27 // pred_fallthru
          _
        // Predicated region
        $region41: #{tpu_custom_call.1} parent=27 // pred_check
          %p230 = pneg %p79
        $region42: #{tpu_custom_call.1} parent=27 // pred_check_branch
          %232 = sbr.rel (%p230) target = $region44
        $region43: #{tpu_custom_call.1} parent=27 // pred_region
          %234 = dma.done [#allocation4], 16
        $region44: #{tpu_custom_call.1} parent=27 // pred_fallthru
          _
      $region28: #{tpu_custom_call.1} parent=5 // pred_fallthru
        _
      %p235 = scmp.le.s32.totalorder 2, %s9
      // Predicated region
      $region45: #{tpu_custom_call.1} parent=5 // pred_check
        %p236 = pneg %p235
      $region46: #{tpu_custom_call.1} parent=5 // pred_check_branch
        %238 = sbr.rel (%p236) target = $region48
      $region47: #{tpu_custom_call.1} parent=5 // pred_region
        %s239 = ssub.s32 %s9, 2
      $region48: #{tpu_custom_call.1} parent=5 // pred_fallthru
        _
    $region6: #{tpu_custom_call.1} parent=1 // loop_footer
      %s13 = sadd.s32 1, %s9
    $region7: #{tpu_custom_call.1} parent=1 // loop_footer_branch
      %8 = sbr.rel target = $region3
    $region8: #{tpu_custom_call.1} parent=1 // loop_exit
      _
    %240 = vsyncpa [#allocation4], 1
    %s241 = scalar_lea.sflag [#allocation4], 1
    %242 = vsyncpa %s241, 1

</llo_original>
